<compile_context>
chip_gen: v7x
topology: tpu7x:2x2x1
jax: 0.10.0
libtpu: 0.0.40
codegen_flags: <defaults>
</compile_context>

<pallas_src>
import jax
import jax.numpy as jnp
from jax.experimental import pallas as pl
from jax.experimental.pallas import tpu as pltpu


_TILE_BYTES_TARGET = 4 * 1024 * 1024   # per weight tile; x2 double-buffered = 8 MiB
_TN_TARGET = 1024                       # target output-lane (n_components) tile


def _round_up(x: int, m: int) -> int:
    return ((x + m - 1) // m) * m


def _pick_tile(total: int, target: int) -> int:
    """Largest multiple of 128 that divides `total` (a 128-multiple) and is <= target."""
    target = max(128, target)
    best, t = 128, 128
    while t <= min(target, total):
        if total % t == 0:
            best = t
        t += 128
    return best


def _pca_gemv_kernel(v_ref, w_ref, o_ref):
    # v_ref: (kb, B, tk)  whole vector (dim-chunked), resident in VMEM for all steps
    # w_ref: (tn, tk)     weight tile in its natural (n_components, dim) layout
    # o_ref: (1, B, tn)   lane-dense partial sum for this (j, k) grid point
    k = pl.program_id(1)
    o_ref[0] = jax.lax.dot_general(
        v_ref[k], w_ref[...],
        dimension_numbers=(((1,), (1,)), ((), ())),   # contract over dim; W never transposed in HBM
        preferred_element_type=jnp.float32,
    )


def pca_transform(weights: jax.Array, vectors: jax.Array, *, dtype=None) -> jax.Array:
    """Pallas equivalent of PCATransformer.forward: weights @ vectors.

    `dtype` is an explicit cast policy: if given, BOTH weights and vectors are
    cast to it (e.g. jnp.bfloat16 halves weight HBM traffic); MXU accumulation
    is always f32.  Default (None) keeps the weights' dtype and casts the
    vector to match — a no-op for the module's all-f32 case.
    """
    M, D = weights.shape
    single = vectors.ndim == 1
    v = vectors[None, :] if single else vectors
    B = v.shape[0]
    assert v.shape[1] == D, "vector dim must match weights' second axis"

    w = weights if dtype is None else weights.astype(dtype)
    v = v.astype(w.dtype)
    itemsize = jnp.dtype(w.dtype).itemsize

    # Pad only to multiples of 128; pick tiles that divide the padded dims.
    n_pad = _round_up(M, 128)
    d_pad = _round_up(D, 128)
    tn = _pick_tile(n_pad, _TN_TARGET)
    tk = _pick_tile(d_pad, max(128, _TILE_BYTES_TARGET // (tn * itemsize)))
    nb, kb = n_pad // tn, d_pad // tk

    # Zero-padding is exact: padded dim-columns contribute 0, padded component
    # rows are sliced off.  (For repeated calls with the same static PCA matrix,
    # pre-pad W once outside this function to skip this copy entirely.)
    if (n_pad, d_pad) != (M, D):
        w = jnp.pad(w, ((0, n_pad - M), (0, d_pad - D)))
    if d_pad != D:
        v = jnp.pad(v, ((0, 0), (0, d_pad - D)))

    # Chunk the (tiny) vector along dim so the kernel indexes it on the leading
    # axis; the whole thing stays resident in VMEM via a constant index_map.
    v_chunks = v.reshape(B, kb, tk).transpose(1, 0, 2)   # (kb, B, tk)

    cost = pl.CostEstimate(
        flops=2 * B * M * D,
        transcendentals=0,
        bytes_accessed=n_pad * d_pad * itemsize + B * d_pad * itemsize
        + kb * B * n_pad * 4,
    )

    parts = pl.pallas_call(
        _pca_gemv_kernel,
        out_shape=jax.ShapeDtypeStruct((kb, B, n_pad), jnp.float32),
        grid=(nb, kb),
        in_specs=[
            pl.BlockSpec((kb, B, tk), lambda j, k: (0, 0, 0)),   # full vector, resident
            pl.BlockSpec((tn, tk), lambda j, k: (j, k)),         # natural-layout W tile
        ],
        out_specs=pl.BlockSpec((1, B, tn), lambda j, k: (k, 0, j)),
        compiler_params=pltpu.CompilerParams(
            dimension_semantics=("parallel", "parallel"),
        ),
        cost_estimate=cost,
    )(v_chunks, w)

    out = parts.sum(axis=0)[:, :M]   # reduce K-tile partials (tiny), drop N padding
    return out[0] if single else out


if __name__ == "__main__":
    # Deterministic synthetic "PCA components" — no file loading.
    n_components, dim = 64, 256
    key = jax.random.PRNGKey(0)
    kw, kv = jax.random.split(key)

    weights = jax.random.normal(kw, (n_components, dim), dtype=jnp.float32)
    # The original export script probes with an all-ones vector; a random one
    # gives a stronger numerical check with identical shape/dtype semantics.
    vectors = jax.random.normal(kv, (dim,), dtype=jnp.float32)

    out = jax.block_until_ready(pca_transform(weights, vectors))
    ref = jnp.matmul(weights, vectors)
    assert out.shape == (n_components,)
    assert out.dtype == jnp.float32
    assert jnp.allclose(out, ref, atol=1e-3, rtol=1e-3), "mismatch vs jnp.matmul"

    # Batched extension: weights streamed from HBM once for all rows.
    vbatch = jax.random.normal(jax.random.PRNGKey(1), (4, dim), dtype=jnp.float32)
    outb = jax.block_until_ready(pca_transform(weights, vbatch))
    refb = vbatch @ weights.T
    assert outb.shape == (4, n_components)
    assert jnp.allclose(outb, refb, atol=1e-3, rtol=1e-3), "batched mismatch"

    print("KERNEL_OK")
</pallas_src>

<mosaic_0001>
module attributes {stable_mosaic.version = 11 : i64} {
  func.func @_pca_gemv_kernel(%arg0: i32, %arg1: i32, %arg2: memref<1x1x256xf32, #tpu.memory_space<vmem>>, %arg3: memref<128x256xf32, #tpu.memory_space<vmem>>, %arg4: memref<1x1x128xf32, #tpu.memory_space<vmem>>) attributes {dimension_semantics = [#tpu.dimension_semantics<parallel>, #tpu.dimension_semantics<parallel>], iteration_bounds = array<i64: 1, 1>, scalar_prefetch = 0 : i64, scratch_operands = 0 : i64, tpu.core_type = #tpu.core_type<tc>, window_params = [{pipeline_mode = #tpu.pipeline_mode<synchronous>, transform_indices = @transform_0, window_bounds = array<i64: 1, 1, 256>}, {transform_indices = @transform_1, window_bounds = array<i64: 128, 256>}, {transform_indices = @transform_2, window_bounds = array<i64: 1, 1, 128>}]} {
    %0 = arith.index_cast %arg1 : i32 to index
    %c0 = arith.constant 0 : index
    %c0_0 = arith.constant 0 : index
    %1 = vector.load %arg2[%0, %c0, %c0_0] : memref<1x1x256xf32, #tpu.memory_space<vmem>>, vector<1x1x256xf32>
    %2 = vector.shape_cast %1 : vector<1x1x256xf32> to vector<1x256xf32>
    %c0_1 = arith.constant 0 : index
    %c0_2 = arith.constant 0 : index
    %3 = vector.load %arg3[%c0_1, %c0_2] : memref<128x256xf32, #tpu.memory_space<vmem>>, vector<128x256xf32>
    %cst = arith.constant dense<0.000000e+00> : vector<1x128xf32>
    %4 = tpu.matmul %2, %3, %cst {dimension_numbers = #tpu.dot_dimension_numbers<[1], [1], [0], [0], [0, 0, 1, 0], [], []>} : vector<1x256xf32>, vector<128x256xf32>, vector<1x128xf32> -> vector<1x128xf32>
    %c0_3 = arith.constant 0 : index
    %c0_4 = arith.constant 0 : index
    %c0_5 = arith.constant 0 : index
    %5 = vector.load %arg4[%c0_3, %c0_4, %c0_5] : memref<1x1x128xf32, #tpu.memory_space<vmem>>, vector<1x1x128xf32>
    %6 = vector.shape_cast %5 : vector<1x1x128xf32> to vector<1x128xf32>
    %7 = vector.shape_cast %4 : vector<1x128xf32> to vector<1x1x128xf32>
    tpu.vector_store %arg4[%c0_3, %c0_4, %c0_5], %7 {strides = array<i32>} : memref<1x1x128xf32, #tpu.memory_space<vmem>>, vector<1x1x128xf32>,
    return
  }
  func.func @transform_0(%arg0: i32, %arg1: i32) -> (i32, i32, i32) {
    %c0_i32 = arith.constant 0 : i32
    %c0_i32_0 = arith.constant 0 : i32
    %c0_i32_1 = arith.constant 0 : i32
    %c0_i32_2 = arith.constant 0 : i32
    return %c0_i32, %c0_i32_0, %c0_i32_1 : i32, i32, i32
  }
  func.func @transform_1(%arg0: i32, %arg1: i32) -> (i32, i32) {
    %c0_i32 = arith.constant 0 : i32
    return %arg0, %arg1 : i32, i32
  }
  func.func @transform_2(%arg0: i32, %arg1: i32) -> (i32, i32, i32) {
    %c0_i32 = arith.constant 0 : i32
    %c0_i32_0 = arith.constant 0 : i32
    return %arg1, %c0_i32, %arg0 : i32, i32, i32
  }
}

</mosaic_0001>

<llo_original>
// kernel: tpu_custom_call.1
$region0: #{tpu_custom_call.1}
  #allocation0 [shape = 'u32[]', space=smem, size = 0x4, offset = 0x4, fixed_abs, tag = 'smem constant byte address 0x4 - core index']
  #allocation1 [shape = 'u32[144,128]{1,0:T(1,128)}', space=vmem, size = 0x12000, scoped, tag = 'internal scratch']
  %s0 = inlined_call_operand.hbm [shape: f32[1,1,256], index: 0, kind: input, shape index: {}]
  %s1 = inlined_call_operand.hbm [shape: f32[128,256], index: 1, kind: input, shape index: {}]
  %s2 = inlined_call_operand.hbm [shape: f32[1,1,128], index: 2, kind: output, shape index: {}]
  %s3 = sld [smem:[#allocation0]]
  $region26: #{tpu_custom_call.1} parent=0
    _
  %s5 = ssub.s32 1, %s3
  %s6 = scalar_select 0, %s5, %s3
  $region1: #{tpu_custom_call.1} parent=0
    #allocation2 [shape = 'u8[1024]{0}', space=vmem, size = 0x400, scoped, tag = 'input window, operand 0, single buffered']
    #allocation3 [shape = 's32[1]{0}', space=sflag, size = 0x4, scoped, tag = 'scoped memory for tpu_custom_call.1']
    #allocation4 [shape = 's32[1]{0}', space=sflag, size = 0x4, scoped, tag = 'scoped memory for tpu_custom_call.1']
    #allocation5 [shape = 'u8[131072]{0}', space=vmem, size = 0x20000, scoped, tag = 'input window, operand 1, single buffered']
    #allocation6 [shape = 's32[1]{0}', space=sflag, size = 0x4, scoped, tag = 'scoped memory for tpu_custom_call.1']
    #allocation7 [shape = 'u8[512]{0}', space=vmem, size = 0x400, scoped, tag = 'output window, operand 0, single buffered']
    %7 = vsyncpa [#allocation3], 0
    %8 = vsyncpa [#allocation6], 0
    %9 = vsyncpa [#allocation4], 0
    // Predicated region
    $region2: #{tpu_custom_call.1} parent=1 // pred_check
      _
    $region3: #{tpu_custom_call.1} parent=1 // pred_check_branch
      %11 = sbr.rel (0) target = $region5
    $region4: #{tpu_custom_call.1} parent=1 // pred_region
      %s13 = ssub.s32 32, 32
      %14 = vsyncadd [#allocation3], %s13
      %s16 = sshll.u32 [#allocation2], 4
      %s17 = int_to_ptr.vmem [resolvable:$true] %s16
      %19 = dma.hbm_to_vmem [thread:$0]  %s0, 32, %s17, [#allocation3]
    $region5: #{tpu_custom_call.1} parent=1 // pred_fallthru
      _
    // Predicated region
    $region6: #{tpu_custom_call.1} parent=1 // pred_check
      _
    $region7: #{tpu_custom_call.1} parent=1 // pred_check_branch
      %21 = sbr.rel (0) target = $region9
    $region8: #{tpu_custom_call.1} parent=1 // pred_region
      %s23 = ssub.s32 4096, 4096
      %24 = vsyncadd [#allocation6], %s23
      %s25 = sshll.u32 [#allocation5], 4
      %s26 = int_to_ptr.vmem [resolvable:$true] %s25
      %31 = dma.hbm_to_vmem [thread:$0]  %s1, 4096, %s26, [#allocation6], 256, 256, 16
    $region9: #{tpu_custom_call.1} parent=1 // pred_fallthru
      _
    // Predicated region
    $region10: #{tpu_custom_call.1} parent=1 // pred_check
      _
    $region11: #{tpu_custom_call.1} parent=1 // pred_check_branch
      %33 = sbr.rel (0) target = $region13
    $region12: #{tpu_custom_call.1} parent=1 // pred_region
      %34 = dma.done [#allocation3], 32
    $region13: #{tpu_custom_call.1} parent=1 // pred_fallthru
      _
    // Predicated region
    $region14: #{tpu_custom_call.1} parent=1 // pred_check
      _
    $region15: #{tpu_custom_call.1} parent=1 // pred_check_branch
      %36 = sbr.rel (0) target = $region17
    $region16: #{tpu_custom_call.1} parent=1 // pred_region
      %37 = dma.done [#allocation6], 4096
    $region17: #{tpu_custom_call.1} parent=1 // pred_fallthru
      _
    %s38 = smul.u32 0, 2
    %s39 = scalar_lea.vmem [#allocation2], %s38
    %v40 = vld [vmem:[%s39] sm:$0x3]
    %v41 = vld [vmem:[#allocation5] sm:$0xff]
    %v42 = vld [vmem:[#allocation5 + $0x8] sm:$0xff]
    %v43 = vld [vmem:[#allocation5 + $0x10] sm:$0xff]
    %v44 = vld [vmem:[#allocation5 + $0x18] sm:$0xff]
    %v45 = vld [vmem:[#allocation5 + $0x20] sm:$0xff]
    %v46 = vld [vmem:[#allocation5 + $0x28] sm:$0xff]
    %v47 = vld [vmem:[#allocation5 + $0x30] sm:$0xff]
    %v48 = vld [vmem:[#allocation5 + $0x38] sm:$0xff]
    %v49 = vld [vmem:[#allocation5 + $0x40] sm:$0xff]
    %v50 = vld [vmem:[#allocation5 + $0x48] sm:$0xff]
    %v51 = vld [vmem:[#allocation5 + $0x50] sm:$0xff]
    %v52 = vld [vmem:[#allocation5 + $0x58] sm:$0xff]
    %v53 = vld [vmem:[#allocation5 + $0x60] sm:$0xff]
    %v54 = vld [vmem:[#allocation5 + $0x68] sm:$0xff]
    %v55 = vld [vmem:[#allocation5 + $0x70] sm:$0xff]
    %v56 = vld [vmem:[#allocation5 + $0x78] sm:$0xff]
    %v57 = vld [vmem:[#allocation5 + $0x80] sm:$0xff]
    %v58 = vld [vmem:[#allocation5 + $0x88] sm:$0xff]
    %v59 = vld [vmem:[#allocation5 + $0x90] sm:$0xff]
    %v60 = vld [vmem:[#allocation5 + $0x98] sm:$0xff]
    %v61 = vld [vmem:[#allocation5 + $0xa0] sm:$0xff]
    %v62 = vld [vmem:[#allocation5 + $0xa8] sm:$0xff]
    %v63 = vld [vmem:[#allocation5 + $0xb0] sm:$0xff]
    %v64 = vld [vmem:[#allocation5 + $0xb8] sm:$0xff]
    %v65 = vld [vmem:[#allocation5 + $0xc0] sm:$0xff]
    %v66 = vld [vmem:[#allocation5 + $0xc8] sm:$0xff]
    %v67 = vld [vmem:[#allocation5 + $0xd0] sm:$0xff]
    %v68 = vld [vmem:[#allocation5 + $0xd8] sm:$0xff]
    %v69 = vld [vmem:[#allocation5 + $0xe0] sm:$0xff]
    %v70 = vld [vmem:[#allocation5 + $0xe8] sm:$0xff]
    %v71 = vld [vmem:[#allocation5 + $0xf0] sm:$0xff]
    %v72 = vld [vmem:[#allocation5 + $0xf8] sm:$0xff]
    %v74 = vlaneseq
    %v75 = vshrl.u32 %v74, 7
    %v76 = vsub.s32 0, %v75
    %v77 = vrot.slane %v40, %v76
    %v78 = vlaneseq
    %v79 = vshrl.u32 %v78, 7
    %v80 = vsub.s32 1, %v79
    %v81 = vrot.slane %v40, %v80
    %84 = vmatprep.subr.mxu0 %v42
    %85 = vmatpush1.xpose.msra.mxu0 %v41
    %86 = vmatprep.subr.mxu0 %v44
    %87 = vmatpush1.xpose.msra.mxu0 %v43
    %88 = vmatprep.subr.mxu0 %v46
    %89 = vmatpush1.xpose.msra.mxu0 %v45
    %90 = vmatprep.subr.mxu0 %v48
    %91 = vmatpush1.xpose.msra.mxu0 %v47
    %92 = vmatprep.subr.mxu0 %v50
    %93 = vmatpush1.xpose.msra.mxu0 %v49
    %94 = vmatprep.subr.mxu0 %v52
    %95 = vmatpush1.xpose.msra.mxu0 %v51
    %96 = vmatprep.subr.mxu0 %v54
    %97 = vmatpush1.xpose.msra.mxu0 %v53
    %98 = vmatprep.subr.mxu0 %v56
    %99 = vmatpush1.xpose.msra.mxu0 %v55
    %100 = vmatprep.subr.mxu0 %v58
    %101 = vmatpush1.xpose.msra.mxu0 %v57
    %102 = vmatprep.subr.mxu0 %v60
    %103 = vmatpush1.xpose.msra.mxu0 %v59
    %104 = vmatprep.subr.mxu0 %v62
    %105 = vmatpush1.xpose.msra.mxu0 %v61
    %106 = vmatprep.subr.mxu0 %v64
    %107 = vmatpush1.xpose.msra.mxu0 %v63
    %108 = vmatprep.subr.mxu0 %v66
    %109 = vmatpush1.xpose.msra.mxu0 %v65
    %110 = vmatprep.subr.mxu0 %v68
    %111 = vmatpush1.xpose.msra.mxu0 %v67
    %112 = vmatprep.subr.mxu0 %v70
    %113 = vmatpush1.xpose.msra.mxu0 %v69
    %114 = vmatprep.subr.mxu0 %v72
    %115 = vmatpush1.xpose.msra.mxu0 %v71
    %116 = vmatprep.subr.mxu0 0.0
    %117 = vmatpush1.xpose.msra.mxu0 0.0
    %118 = vmatprep.subr.mxu0 0.0
    %119 = vmatpush1.xpose.msra.mxu0 0.0
    %120 = vmatprep.subr.mxu0 0.0
    %121 = vmatpush1.xpose.msra.mxu0 0.0
    %122 = vmatprep.subr.mxu0 0.0
    %123 = vmatpush1.xpose.msra.mxu0 0.0
    %124 = vmatprep.subr.mxu0 0.0
    %125 = vmatpush1.xpose.msra.mxu0 0.0
    %126 = vmatprep.subr.mxu0 0.0
    %127 = vmatpush1.xpose.msra.mxu0 0.0
    %128 = vmatprep.subr.mxu0 0.0
    %129 = vmatpush1.xpose.msra.mxu0 0.0
    %130 = vmatprep.subr.mxu0 0.0
    %131 = vmatpush1.xpose.msra.mxu0 0.0
    %132 = vmatprep.subr.mxu0 0.0
    %133 = vmatpush1.xpose.msra.mxu0 0.0
    %134 = vmatprep.subr.mxu0 0.0
    %135 = vmatpush1.xpose.msra.mxu0 0.0
    %136 = vmatprep.subr.mxu0 0.0
    %137 = vmatpush1.xpose.msra.mxu0 0.0
    %138 = vmatprep.subr.mxu0 0.0
    %139 = vmatpush1.xpose.msra.mxu0 0.0
    %140 = vmatprep.subr.mxu0 0.0
    %141 = vmatpush1.xpose.msra.mxu0 0.0
    %142 = vmatprep.subr.mxu0 0.0
    %143 = vmatpush1.xpose.msra.mxu0 0.0
    %144 = vmatprep.subr.mxu0 0.0
    %145 = vmatpush1.xpose.msra.mxu0 0.0
    %146 = vmatprep.subr.mxu0 0.0
    %147 = vmatpush1.xpose.msra.mxu0 0.0
    %148 = vmatprep.mubr.f32.mxu0 %v81
    %149 = vmatmul.mubr.f32.gmra.mrb[0].mxu0 %v77
    %v150 = vpop.f32.mrb[0].mxu0
    %v151 = vadd.f32 0.0, %v150
    %v152 = vpop.f32.mrb[0].mxu0
    %153 = vdwg.mxu0
    %154 = vst [vmem:[#allocation7] sm:$0x1] %v151
    // Predicated region
    $region18: #{tpu_custom_call.1} parent=1 // pred_check
      _
    $region19: #{tpu_custom_call.1} parent=1 // pred_check_branch
      %156 = sbr.rel (0) target = $region21
    $region20: #{tpu_custom_call.1} parent=1 // pred_region
      %s158 = ssub.s32 16, 16
      %159 = vsyncadd [#allocation4], %s158
      %s161 = sshll.u32 [#allocation7], 4
      %s162 = int_to_ptr.vmem [resolvable:$true] %s161
      %164 = dma.vmem_to_hbm [thread:$0]  %s162, 16, %s2, [#allocation4]
    $region21: #{tpu_custom_call.1} parent=1 // pred_fallthru
      _
    // Predicated region
    $region22: #{tpu_custom_call.1} parent=1 // pred_check
      _
    $region23: #{tpu_custom_call.1} parent=1 // pred_check_branch
      %166 = sbr.rel (0) target = $region25
    $region24: #{tpu_custom_call.1} parent=1 // pred_region
      %167 = dma.done [#allocation4], 16
    $region25: #{tpu_custom_call.1} parent=1 // pred_fallthru
      _
    %168 = vsyncpa [#allocation3], 1
    %169 = vsyncpa [#allocation6], 1
    %170 = vsyncpa [#allocation4], 1

</llo_original>
